<compile_context>
chip_gen: v5e
topology: v5e:2x2
jax: 0.10.0
libtpu: 0.0.40
codegen_flags: <defaults>
</compile_context>

<pallas_src>
import jax
import jax.numpy as jnp
from jax.experimental import pallas as pl
from jax.experimental.pallas import tpu as pltpu


def mlp_kernel(x_ref, w1_ref, b1_ref, w2_ref, b2_ref, o_ref):
    # matmul1 (bf16 in, f32 acc) -> +bias -> relu
    h = jnp.dot(x_ref[...], w1_ref[...], preferred_element_type=jnp.float32)
    h = jnp.maximum(h + b1_ref[...], 0.0)                 # (1, H) broadcasts over rows

    # matmul2 (bf16 in, f32 acc) -> +bias
    logits = jnp.dot(h.astype(jnp.bfloat16), w2_ref[...],
                     preferred_element_type=jnp.float32)
    logits = logits + b2_ref[...]

    # numerically stable softmax over axis=1 (last axis); exact f32 normalization
    m = jnp.max(logits, axis=-1, keepdims=True)
    e = jnp.exp(logits - m)
    denom = jnp.sum(e, axis=-1, keepdims=True)
    o_ref[...] = (e / denom).astype(o_ref.dtype)


def mlp_forward(x, w1, b1, w2, b2, *, block_b=256):
    B, D = x.shape
    H = w1.shape[1]
    C = w2.shape[1]

    # bf16 operands for the MXU; biases stay f32 (added to the f32 accumulators).
    xb = x.astype(jnp.bfloat16)
    w1b = w1.astype(jnp.bfloat16)
    w2b = w2.astype(jnp.bfloat16)
    b1r = b1.reshape(1, H).astype(jnp.float32)
    b2r = b2.reshape(1, C).astype(jnp.float32)

    cost = pl.CostEstimate(
        flops=2 * B * (D * H + H * C),
        transcendentals=B * C,                              # exp in the softmax
        bytes_accessed=(xb.size * 2 + w1b.size * 2 + w2b.size * 2
                        + b1r.size * 4 + b2r.size * 4 + B * C * 4),
    )

    if B <= block_b or B % block_b != 0:
        # Small / irregular batch: single shot, everything VMEM-resident, no grid.
        return pl.pallas_call(
            mlp_kernel,
            out_shape=jax.ShapeDtypeStruct((B, C), jnp.float32),
            in_specs=[pl.BlockSpec(memory_space=pltpu.MemorySpace.VMEM)] * 5,
            out_specs=pl.BlockSpec(memory_space=pltpu.MemorySpace.VMEM),
            cost_estimate=cost,
        )(xb, w1b, b1r, w2b, b2r)

    # Large batch: stream (block_b, D) activation tiles; weights/biases stay
    # resident in VMEM (constant block index across the whole grid).
    return pl.pallas_call(
        mlp_kernel,
        out_shape=jax.ShapeDtypeStruct((B, C), jnp.float32),
        grid=(B // block_b,),
        in_specs=[
            pl.BlockSpec((block_b, D), lambda i: (i, 0)),   # x tile streams
            pl.BlockSpec((D, H), lambda i: (0, 0)),         # w1 resident
            pl.BlockSpec((1, H), lambda i: (0, 0)),         # b1 resident
            pl.BlockSpec((H, C), lambda i: (0, 0)),         # w2 resident
            pl.BlockSpec((1, C), lambda i: (0, 0)),         # b2 resident
        ],
        out_specs=pl.BlockSpec((block_b, C), lambda i: (i, 0)),
        compiler_params=pltpu.CompilerParams(
            dimension_semantics=("parallel",),              # v7x: 2 TCs split batch
            vmem_limit_bytes=32 * 1024 * 1024,              # safe on v7x's 64 MiB VMEM
        ),
        cost_estimate=cost,
    )(xb, w1b, b1r, w2b, b2r)


def reference_forward(x, w1, b1, w2, b2):
    # Mirrors the kernel's bf16-matmul / f32-accumulate numerics.
    xb = x.astype(jnp.bfloat16)
    w1b = w1.astype(jnp.bfloat16)
    w2b = w2.astype(jnp.bfloat16)
    h = jnp.maximum(jnp.dot(xb, w1b, preferred_element_type=jnp.float32) + b1, 0.0)
    logits = jnp.dot(h.astype(jnp.bfloat16), w2b,
                     preferred_element_type=jnp.float32) + b2
    return jax.nn.softmax(logits, axis=1)


if __name__ == "__main__":
    input_size, hidden_size, class_num = 64, 64, 2
    batch = 8

    key = jax.random.PRNGKey(0)
    kx, kw1, kb1, kw2, kb2 = jax.random.split(key, 5)

    # Deterministic parameter init (uniform, PyTorch-like fan_in scaling).
    bound1 = 1.0 / jnp.sqrt(input_size)
    bound2 = 1.0 / jnp.sqrt(hidden_size)
    x = jax.random.normal(kx, (batch, input_size), dtype=jnp.float32)
    w1 = jax.random.uniform(kw1, (input_size, hidden_size), jnp.float32, -bound1, bound1)
    b1 = jax.random.uniform(kb1, (hidden_size,), jnp.float32, -bound1, bound1)
    w2 = jax.random.uniform(kw2, (hidden_size, class_num), jnp.float32, -bound2, bound2)
    b2 = jax.random.uniform(kb2, (class_num,), jnp.float32, -bound2, bound2)

    # Small-batch (no-grid) path.
    out = mlp_forward(x, w1, b1, w2, b2)
    jax.block_until_ready(out)
    ref = reference_forward(x, w1, b1, w2, b2)
    assert out.shape == (batch, class_num)
    assert jnp.allclose(out, ref, atol=2e-3, rtol=2e-3), "mismatch vs reference (small batch)"
    assert jnp.allclose(jnp.sum(out, axis=1), 1.0, atol=2e-3), "softmax rows must sum to ~1"

    # Large-batch (batch-tiled, weights-resident) path.
    big_batch = 1024
    xb_big = jax.random.normal(jax.random.PRNGKey(1), (big_batch, input_size), jnp.float32)
    out_big = mlp_forward(xb_big, w1, b1, w2, b2, block_b=256)
    jax.block_until_ready(out_big)
    ref_big = reference_forward(xb_big, w1, b1, w2, b2)
    assert out_big.shape == (big_batch, class_num)
    assert jnp.allclose(out_big, ref_big, atol=2e-3, rtol=2e-3), "mismatch vs reference (tiled)"
    assert jnp.allclose(jnp.sum(out_big, axis=1), 1.0, atol=2e-3), "softmax rows must sum to ~1"

    print("KERNEL_OK")
</pallas_src>

<mosaic_0001>
module attributes {stable_mosaic.version = 11 : i64} {
  func.func @mlp_kernel(%arg0: memref<8x64xbf16, #tpu.memory_space<vmem>>, %arg1: memref<64x64xbf16, #tpu.memory_space<vmem>>, %arg2: memref<1x64xf32, #tpu.memory_space<vmem>>, %arg3: memref<64x2xbf16, #tpu.memory_space<vmem>>, %arg4: memref<1x2xf32, #tpu.memory_space<vmem>>, %arg5: memref<8x2xf32, #tpu.memory_space<vmem>>) attributes {dimension_semantics = [], scalar_prefetch = 0 : i64, scratch_operands = 0 : i64, tpu.core_type = #tpu.core_type<tc>} {
    %c0 = arith.constant 0 : index
    %c0_0 = arith.constant 0 : index
    %0 = vector.load %arg0[%c0, %c0_0] : memref<8x64xbf16, #tpu.memory_space<vmem>>, vector<8x64xbf16>
    %c0_1 = arith.constant 0 : index
    %c0_2 = arith.constant 0 : index
    %1 = vector.load %arg1[%c0_1, %c0_2] : memref<64x64xbf16, #tpu.memory_space<vmem>>, vector<64x64xbf16>
    %cst = arith.constant dense<0.000000e+00> : vector<8x64xf32>
    %2 = tpu.matmul %0, %1, %cst {dimension_numbers = #tpu.dot_dimension_numbers<[1], [0], [0], [1], [0, 0, 1, 1], [], []>} : vector<8x64xbf16>, vector<64x64xbf16>, vector<8x64xf32> -> vector<8x64xf32>
    %c0_3 = arith.constant 0 : index
    %c0_4 = arith.constant 0 : index
    %3 = vector.load %arg2[%c0_3, %c0_4] : memref<1x64xf32, #tpu.memory_space<vmem>>, vector<1x64xf32>
    %4 = vector.broadcast %3 : vector<1x64xf32> to vector<8x64xf32>
    %5 = arith.addf %2, %4 : vector<8x64xf32>
    %cst_5 = arith.constant 0.000000e+00 : f32
    %6 = vector.broadcast %cst_5 : f32 to vector<8x64xf32>
    %7 = arith.maximumf %5, %6 : vector<8x64xf32>
    %8 = arith.truncf %7 : vector<8x64xf32> to vector<8x64xbf16>
    %c0_6 = arith.constant 0 : index
    %c0_7 = arith.constant 0 : index
    %9 = vector.load %arg3[%c0_6, %c0_7] : memref<64x2xbf16, #tpu.memory_space<vmem>>, vector<64x2xbf16>
    %cst_8 = arith.constant dense<0.000000e+00> : vector<8x2xf32>
    %10 = tpu.matmul %8, %9, %cst_8 {dimension_numbers = #tpu.dot_dimension_numbers<[1], [0], [0], [1], [0, 0, 1, 1], [], []>} : vector<8x64xbf16>, vector<64x2xbf16>, vector<8x2xf32> -> vector<8x2xf32>
    %c0_9 = arith.constant 0 : index
    %c0_10 = arith.constant 0 : index
    %11 = vector.load %arg4[%c0_9, %c0_10] : memref<1x2xf32, #tpu.memory_space<vmem>>, vector<1x2xf32>
    %12 = vector.broadcast %11 : vector<1x2xf32> to vector<8x2xf32>
    %13 = arith.addf %10, %12 : vector<8x2xf32>
    %cst_11 = arith.constant dense<0xFF800000> : vector<8xf32>
    %14 = vector.multi_reduction <maximumf>, %13, %cst_11 [1] : vector<8x2xf32> to vector<8xf32>
    %15 = vector.shape_cast %14 : vector<8xf32> to vector<8x1xf32>
    %16 = vector.broadcast %15 : vector<8x1xf32> to vector<8x2xf32>
    %17 = arith.subf %13, %16 : vector<8x2xf32>
    %18 = math.exp %17 : vector<8x2xf32>
    %cst_12 = arith.constant dense<0.000000e+00> : vector<8xf32>
    %19 = vector.multi_reduction <add>, %18, %cst_12 [1] : vector<8x2xf32> to vector<8xf32>
    %20 = vector.shape_cast %19 : vector<8xf32> to vector<8x1xf32>
    %21 = vector.broadcast %20 : vector<8x1xf32> to vector<8x2xf32>
    %22 = arith.divf %18, %21 : vector<8x2xf32>
    %c0_13 = arith.constant 0 : index
    %c0_14 = arith.constant 0 : index
    %23 = vector.load %arg5[%c0_13, %c0_14] : memref<8x2xf32, #tpu.memory_space<vmem>>, vector<8x2xf32>
    tpu.vector_store %arg5[%c0_13, %c0_14], %22 {strides = array<i32>} : memref<8x2xf32, #tpu.memory_space<vmem>>, vector<8x2xf32>,
    return
  }
}

</mosaic_0001>

<llo_original>
// kernel: tpu_custom_call.1
$region0: #{tpu_custom_call.1}
  #allocation0 [shape = 'u32[]', space=smem, size = 0x4, offset = 0x4, fixed_abs, tag = 'smem constant byte address 0x4 - core index']
  #allocation1 [shape = 'u32[72,128]{1,0:T(1,128)}', space=vmem, size = 0x9000, scoped, tag = 'internal scratch']
  %s0 = inlined_call_operand.hbm [shape: bf16[8,64], index: 0, kind: input, shape index: {}]
  %s1 = inlined_call_operand.vmem [shape: bf16[64,64], index: 1, kind: input, shape index: {}]
  %s2 = inlined_call_operand.vmem [shape: f32[1,64], index: 2, kind: input, shape index: {}]
  %s3 = inlined_call_operand.vmem [shape: bf16[64,2], index: 3, kind: input, shape index: {}]
  %s4 = inlined_call_operand.vmem [shape: f32[1,2], index: 4, kind: input, shape index: {}]
  %s5 = inlined_call_operand.vmem [shape: f32[8,2], index: 5, kind: output, shape index: {}]
  %s6 = sld [smem:[#allocation0]]
  $region34: #{tpu_custom_call.1} parent=0
    _
  %s8 = ssub.s32 1, %s6
  %s9 = scalar_select 0, %s8, %s6
  $region1: #{tpu_custom_call.1} parent=0
    #allocation2 [shape = 'u8[2048]{0}', space=vmem, size = 0x800, scoped, tag = 'input window, operand 0, single buffered']
    #allocation3 [shape = 's32[1]{0}', space=sflag, size = 0x4, scoped, tag = 'scoped memory for tpu_custom_call.1']
    %10 = vsyncpa [#allocation3], 0
    // Predicated region
    $region2: #{tpu_custom_call.1} parent=1 // pred_check
      _
    $region3: #{tpu_custom_call.1} parent=1 // pred_check_branch
      %12 = sbr.rel (0) target = $region5
    $region4: #{tpu_custom_call.1} parent=1 // pred_region
      %14 = vsyncadd [#allocation3], 0
      %s16 = sshll.u32 %s0, 4
      %s17 = int_to_ptr.hbm [resolvable:$true] %s16
      %s18 = sshll.u32 [#allocation2], 4
      %s19 = int_to_ptr.vmem [resolvable:$true] %s18
      %21 = dma.hbm_to_vmem [thread:$0]  %s17, 64, %s19, [#allocation3]
    $region5: #{tpu_custom_call.1} parent=1 // pred_fallthru
      _
    // Predicated region
    $region6: #{tpu_custom_call.1} parent=1 // pred_check
      _
    $region7: #{tpu_custom_call.1} parent=1 // pred_check_branch
      %23 = sbr.rel (0) target = $region9
    $region8: #{tpu_custom_call.1} parent=1 // pred_region
      _
    $region9: #{tpu_custom_call.1} parent=1 // pred_fallthru
      _
    // Predicated region
    $region10: #{tpu_custom_call.1} parent=1 // pred_check
      _
    $region11: #{tpu_custom_call.1} parent=1 // pred_check_branch
      %25 = sbr.rel (0) target = $region13
    $region12: #{tpu_custom_call.1} parent=1 // pred_region
      _
    $region13: #{tpu_custom_call.1} parent=1 // pred_fallthru
      _
    // Predicated region
    $region14: #{tpu_custom_call.1} parent=1 // pred_check
      _
    $region15: #{tpu_custom_call.1} parent=1 // pred_check_branch
      %27 = sbr.rel (0) target = $region17
    $region16: #{tpu_custom_call.1} parent=1 // pred_region
      _
    $region17: #{tpu_custom_call.1} parent=1 // pred_fallthru
      _
    // Predicated region
    $region18: #{tpu_custom_call.1} parent=1 // pred_check
      _
    $region19: #{tpu_custom_call.1} parent=1 // pred_check_branch
      %29 = sbr.rel (0) target = $region21
    $region20: #{tpu_custom_call.1} parent=1 // pred_region
      _
    $region21: #{tpu_custom_call.1} parent=1 // pred_fallthru
      _
    // Predicated region
    $region22: #{tpu_custom_call.1} parent=1 // pred_check
      _
    $region23: #{tpu_custom_call.1} parent=1 // pred_check_branch
      %31 = sbr.rel (0) target = $region25
    $region24: #{tpu_custom_call.1} parent=1 // pred_region
      %33 = dma.done [#allocation3], 64
    $region25: #{tpu_custom_call.1} parent=1 // pred_fallthru
      _
    %v35 = vld [vmem:[#allocation2] sm:$0xf]
    %v36 = vld [vmem:[%s1] sm:$0xf]
    %v37 = vld [vmem:[%s1 + $0x4] sm:$0xf]
    %v38 = vld [vmem:[%s1 + $0x8] sm:$0xf]
    %v39 = vld [vmem:[%s1 + $0xc] sm:$0xf]
    %v40 = vld [vmem:[%s1 + $0x10] sm:$0xf]
    %v41 = vld [vmem:[%s1 + $0x14] sm:$0xf]
    %v42 = vld [vmem:[%s1 + $0x18] sm:$0xf]
    %v43 = vld [vmem:[%s1 + $0x1c] sm:$0xf]
    %v44 = vld [vmem:[%s2] sm:$0x1]
    %v46 = vperm.slane %v44, 0
    %v56 = vunpack.c.l.b16 %v36
    %v57 = vunpack.c.l.b16 %v37
    %v58 = vunpack.c.l.b16 %v38
    %v59 = vunpack.c.l.b16 %v39
    %v60 = vunpack.c.l.b16 %v40
    %v61 = vunpack.c.l.b16 %v41
    %v62 = vunpack.c.l.b16 %v42
    %v63 = vunpack.c.l.b16 %v43
    %v64 = vpack.c.b16 %v57, %v56
    %v65 = vpack.c.b16 %v59, %v58
    %v66 = vpack.c.b16 %v61, %v60
    %v67 = vpack.c.b16 %v63, %v62
    %vm72 = vcmask 523264
    %v74 = vsel %vm72, %v35, 0
    %76 = vmatpush.bf16.msra.mxu0 0
    %77 = vmatpush.bf16.msra.mxu0 0
    %78 = vmatpush.bf16.msra.mxu0 0
    %79 = vmatpush.bf16.msra.mxu0 0
    %80 = vmatpush.bf16.msra.mxu0 %v67
    %81 = vmatpush.bf16.msra.mxu0 %v66
    %82 = vmatpush.bf16.msra.mxu0 %v65
    %83 = vmatpush.bf16.msra.mxu0 %v64
    %84 = vmatmul.bf16.gmra.mxu0 %v74
    %v85 = vpop.f32.mrf.mxu0
    %v86 = vadd.f32 %v46, %v85
    %v87 = vpop.f32.mrf.mxu0
    %88 = vdwg.mxu0
    %v89 = vmax.f32 %v86, 0.0
    %v90 = vpack.c.bf16 %v89, %v89
    %v91 = vld [vmem:[%s3] sm:$0xf]
    %v92 = vld [vmem:[%s3 + $0x4] sm:$0xf]
    %v93 = vld [vmem:[%s3 + $0x8] sm:$0xf]
    %v94 = vld [vmem:[%s3 + $0xc] sm:$0xf]
    %v95 = vld [vmem:[%s3 + $0x10] sm:$0xf]
    %v96 = vld [vmem:[%s3 + $0x14] sm:$0xf]
    %v97 = vld [vmem:[%s3 + $0x18] sm:$0xf]
    %v98 = vld [vmem:[%s3 + $0x1c] sm:$0xf]
    %v99 = vld [vmem:[%s4] sm:$0x1]
    %v101 = vperm.slane %v99, 0
    %v111 = vunpack.c.l.b16 %v91
    %v112 = vunpack.c.l.b16 %v92
    %v113 = vunpack.c.l.b16 %v93
    %v114 = vunpack.c.l.b16 %v94
    %v115 = vunpack.c.l.b16 %v95
    %v116 = vunpack.c.l.b16 %v96
    %v117 = vunpack.c.l.b16 %v97
    %v118 = vunpack.c.l.b16 %v98
    %v119 = vpack.c.b16 %v112, %v111
    %v120 = vpack.c.b16 %v114, %v113
    %v121 = vpack.c.b16 %v116, %v115
    %v122 = vpack.c.b16 %v118, %v117
    %v128 = vsel %vm72, %v90, 0
    %130 = vmatpush.bf16.msra.mxu0 0
    %131 = vmatpush.bf16.msra.mxu0 0
    %132 = vmatpush.bf16.msra.mxu0 0
    %133 = vmatpush.bf16.msra.mxu0 0
    %134 = vmatpush.bf16.msra.mxu0 %v122
    %135 = vmatpush.bf16.msra.mxu0 %v121
    %136 = vmatpush.bf16.msra.mxu0 %v120
    %137 = vmatpush.bf16.msra.mxu0 %v119
    %138 = vmatmul.bf16.gmra.mxu0 %v128
    %v139 = vpop.f32.mrf.mxu0
    %v140 = vadd.f32 %v101, %v139
    %v141 = vpop.f32.mrf.mxu0
    %142 = vdwg.mxu0
    %vm143 = vcmask 15360
    %v144 = vsel %vm143, %v140, -inf
    %145 = vmax.xlane.f32.xlu0 %v144
    %v146 = vpop.xlane.xlu0 %145
    %v147 = vsub.f32 %v140, %v146
    %v148 = vmul.f32 %v147, 1.442695
    %v149 = vpow.pop %v148
    %v150 = vsel %vm143, %v149, 0.0
    %151 = vadd.xlane.f32.xlu0 %v150
    %v152 = vpop.xlane.xlu0 %151
    %v153 = vrcp.pop %v152
    %v154 = vmul.f32 %v152, %v153
    %v155 = vsub.f32 1.0, %v154
    %v156 = vmul.f32 %v153, %v155
    %v157 = vadd.f32 %v153, %v156
    %vm158 = vweird.f32 %v152
    %vm159 = vweird.f32 %v153
    %vm160 = vmor %vm158, %vm159
    %v161 = vsel %vm160, %v153, %v157
    %v162 = vand.u32 2147483647, %v152
    %vm163 = vcmp.eq.f32.partialorder %v162, 8.507059e+37
    %v164 = vand.u32 %v152, 2147483648
    %v165 = vor.u32 1.1754944e-38, %v164
    %v166 = vsel %vm163, %v165, %v161
    %v167 = vmul.f32 %v149, %v166
    %168 = vst.msk [vmem:[%s5] sm:$0xff] %vm143, %v167
    // Predicated region
    $region26: #{tpu_custom_call.1} parent=1 // pred_check
      _
    $region27: #{tpu_custom_call.1} parent=1 // pred_check_branch
      %170 = sbr.rel (0) target = $region29
    $region28: #{tpu_custom_call.1} parent=1 // pred_region
      _
    $region29: #{tpu_custom_call.1} parent=1 // pred_fallthru
      _
    // Predicated region
    $region30: #{tpu_custom_call.1} parent=1 // pred_check
      _
    $region31: #{tpu_custom_call.1} parent=1 // pred_check_branch
      %172 = sbr.rel (0) target = $region33
    $region32: #{tpu_custom_call.1} parent=1 // pred_region
      _
    $region33: #{tpu_custom_call.1} parent=1 // pred_fallthru
      _
    %173 = vsyncpa [#allocation3], 1

</llo_original>
